<compile_context>
chip_gen: v6e
topology: v6e:2x2x1
jax: 0.10.0
libtpu: 0.0.40
codegen_flags: <defaults>
</compile_context>

<pallas_src>
import functools

import jax
import jax.numpy as jnp
from jax.experimental import pallas as pl
from jax.experimental.pallas import tpu as pltpu


# -----------------------------------------------------------------------------
# Tile selection: largest multiple of 128 that divides S and keeps all
# double-buffered in/out tiles comfortably inside VMEM on every generation.
# -----------------------------------------------------------------------------
def _pick_tile_s(S, N, C, itemsize, budget_bytes=8 << 20):
    if S % 128 != 0:
        # TODO(synk): non-128-multiple spatial sizes fall back to one full-S
        # block (legal, but unpipelined); pad S upstream if this ever bites.
        return S
    per_lane_bytes = max(1, N * C * itemsize)
    max_tile = max(128, (budget_bytes // (6 * per_lane_bytes)) // 128 * 128)
    best = 128
    t = 128
    while t <= min(S, max_tile):
        if S % t == 0:
            best = t
        t += 128
    return best


_COMPILER_PARAMS_REDUCE = pltpu.CompilerParams(
    dimension_semantics=("arbitrary",), vmem_limit_bytes=32 << 20)
_COMPILER_PARAMS_PARALLEL = pltpu.CompilerParams(
    dimension_semantics=("parallel",), vmem_limit_bytes=32 << 20)


# -----------------------------------------------------------------------------
# Kernel 1: tiled per-(n, c) sum / sum-of-squares accumulation over S, fused
# with the batch-stats + domain-MLP "affine params" computation at the last
# grid step.  Folds everything into per-(n, c) scale / shift:
#   y = gamma * (sigma * (x - mean) * inv_std + mu) + beta
#     = scale * x + shift
#   scale = gamma * sigma * inv_std
#   shift = gamma * (mu - sigma * mean * inv_std) + beta
# -----------------------------------------------------------------------------
def _stats_params_kernel(x_ref, gamma_ref, beta_ref,
                         w1_ref, b1_ref, w2_ref, b2_ref,
                         scale_ref, shift_ref,
                         sum_ref, sumsq_ref, *, count_s, count_ns):
    @pl.when(pl.program_id(0) == 0)
    def _():
        sum_ref[...] = jnp.zeros_like(sum_ref)
        sumsq_ref[...] = jnp.zeros_like(sumsq_ref)

    x = x_ref[...].astype(jnp.float32)          # (N, C, TILE_S)
    sum_ref[...] += jnp.sum(x, axis=-1)         # (N, C)
    sumsq_ref[...] += jnp.sum(x * x, axis=-1)   # (N, C)

    @pl.when(pl.program_id(0) == pl.num_programs(0) - 1)
    def _():
        C = sum_ref.shape[-1]
        s_nc = sum_ref[...]                                    # (N, C)
        pooled = s_nc * (1.0 / count_s)                        # x.mean(dim=[2,3,4])
        mean_c = jnp.sum(s_nc, axis=0, keepdims=True) * (1.0 / count_ns)   # (1, C)
        ex2_c = jnp.sum(sumsq_ref[...], axis=0, keepdims=True) * (1.0 / count_ns)
        var_c = jnp.maximum(ex2_c - mean_c * mean_c, 0.0)      # biased (unbiased=False)
        inv_std = jax.lax.rsqrt(var_c + 1e-5)                  # EUP slot

        # domain MLP: Linear -> ReLU -> Linear -> Tanh   (MXU matmuls, f32 acc)
        h = jnp.dot(pooled, w1_ref[...],
                    preferred_element_type=jnp.float32) + b1_ref[...]
        h = jnp.maximum(h, 0.0)
        dp = jnp.tanh(jnp.dot(h, w2_ref[...],
                              preferred_element_type=jnp.float32) + b2_ref[...])
        mu = dp[:, :C]                                         # (N, C)
        sigma = dp[:, C:]                                      # (N, C)

        gamma = gamma_ref[...]                                 # (1, C)
        beta = beta_ref[...]                                   # (1, C)
        scale_ref[...] = gamma * sigma * inv_std
        shift_ref[...] = gamma * (mu - sigma * mean_c * inv_std) + beta


def _compute_scale_shift(x_ncs, gamma, beta, w1, b1, w2, b2, tile_s):
    N, C, S = x_ncs.shape
    Hd = w1.shape[1]
    kernel = functools.partial(_stats_params_kernel,
                               count_s=float(S), count_ns=float(N * S))
    return pl.pallas_call(
        kernel,
        out_shape=(jax.ShapeDtypeStruct((N, C), jnp.float32),
                   jax.ShapeDtypeStruct((N, C), jnp.float32)),
        grid=(S // tile_s,),
        in_specs=[
            pl.BlockSpec((N, C, tile_s), lambda s: (0, 0, s)),
            pl.BlockSpec((1, C), lambda s: (0, 0)),
            pl.BlockSpec((1, C), lambda s: (0, 0)),
            pl.BlockSpec((C, Hd), lambda s: (0, 0)),
            pl.BlockSpec((1, Hd), lambda s: (0, 0)),
            pl.BlockSpec((Hd, 2 * C), lambda s: (0, 0)),
            pl.BlockSpec((1, 2 * C), lambda s: (0, 0)),
        ],
        out_specs=(pl.BlockSpec((N, C), lambda s: (0, 0)),
                   pl.BlockSpec((N, C), lambda s: (0, 0))),
        scratch_shapes=[pltpu.VMEM((N, C), jnp.float32),
                        pltpu.VMEM((N, C), jnp.float32)],
        compiler_params=_COMPILER_PARAMS_REDUCE,
    )(
        x_ncs,
        gamma.reshape(1, C).astype(jnp.float32),
        beta.reshape(1, C).astype(jnp.float32),
        w1.astype(jnp.float32),
        b1.reshape(1, Hd).astype(jnp.float32),
        w2.astype(jnp.float32),
        b2.reshape(1, 2 * C).astype(jnp.float32),
    )


# -----------------------------------------------------------------------------
# Kernel 2: tiled elementwise normalize + adaptive affine (one FMA / element).
# -----------------------------------------------------------------------------
def _normalize_kernel(x_ref, scale_ref, shift_ref, o_ref):
    x = x_ref[...].astype(jnp.float32)                      # (N, C, TILE_S)
    y = scale_ref[...] * x + shift_ref[...]                 # (N, C, 1) lane-broadcast
    o_ref[...] = y.astype(o_ref.dtype)


def _apply_affine(x_ncs, scale_nc1, shift_nc1, tile_s):
    N, C, S = x_ncs.shape
    return pl.pallas_call(
        _normalize_kernel,
        out_shape=jax.ShapeDtypeStruct((N, C, S), x_ncs.dtype),
        grid=(S // tile_s,),
        in_specs=[
            pl.BlockSpec((N, C, tile_s), lambda s: (0, 0, s)),
            pl.BlockSpec((N, C, 1), lambda s: (0, 0, 0)),
            pl.BlockSpec((N, C, 1), lambda s: (0, 0, 0)),
        ],
        out_specs=pl.BlockSpec((N, C, tile_s), lambda s: (0, 0, s)),
        compiler_params=_COMPILER_PARAMS_PARALLEL,
    )(x_ncs, scale_nc1, shift_nc1)


# -----------------------------------------------------------------------------
# TAdaBN3D forward (PyTorch NCDHW convention at the boundary)
# -----------------------------------------------------------------------------
def tadabn3d_forward(params, x_ncdhw):
    N, C, D, H, W = x_ncdhw.shape
    S = D * H * W
    x = x_ncdhw.reshape(N, C, S)
    tile_s = _pick_tile_s(S, N, C, jnp.dtype(x.dtype).itemsize)

    scale_nc, shift_nc = _compute_scale_shift(
        x, params["gamma"], params["beta"],
        params["w1"], params["b1"], params["w2"], params["b2"], tile_s)

    y = _apply_affine(x,
                      scale_nc.reshape(N, C, 1),
                      shift_nc.reshape(N, C, 1),
                      tile_s)
    return y.reshape(N, C, D, H, W)


# -----------------------------------------------------------------------------
# Plain-JAX reference (mirrors the PyTorch module) + synthetic params
# -----------------------------------------------------------------------------
def tadabn3d_reference(params, x):
    C = x.shape[1]
    mean = x.mean(axis=(0, 2, 3, 4), keepdims=True)
    var = ((x - mean) ** 2).mean(axis=(0, 2, 3, 4), keepdims=True)  # unbiased=False
    pooled = x.mean(axis=(2, 3, 4))                                 # (N, C)
    h = jnp.maximum(
        jnp.dot(pooled, params["w1"], precision=jax.lax.Precision.HIGHEST)
        + params["b1"], 0.0)
    dp = jnp.tanh(
        jnp.dot(h, params["w2"], precision=jax.lax.Precision.HIGHEST)
        + params["b2"])
    mu = dp[:, :C].reshape(-1, C, 1, 1, 1)
    sigma = dp[:, C:].reshape(-1, C, 1, 1, 1)
    x_norm = (x - mean) / jnp.sqrt(var + 1e-5)
    x_adapted = sigma * x_norm + mu
    return (params["gamma"].reshape(1, C, 1, 1, 1) * x_adapted
            + params["beta"].reshape(1, C, 1, 1, 1))


def init_params(key, num_features, hidden=64):
    k1, k2, k3, k4, k5, k6 = jax.random.split(key, 6)

    def nrm(k, shape, scale=0.1):
        return scale * jax.random.normal(k, shape, dtype=jnp.float32)

    return {
        # nn.Parameter inits are ones/zeros; perturb slightly to exercise paths.
        "gamma": 1.0 + nrm(k1, (num_features,)),
        "beta": nrm(k2, (num_features,)),
        # nn.Linear weights stored pre-transposed as (in, out).
        "w1": nrm(k3, (num_features, hidden), 0.3),
        "b1": nrm(k4, (hidden,), 0.3),
        "w2": nrm(k5, (hidden, 2 * num_features), 0.3),
        "b2": nrm(k6, (2 * num_features,), 0.3),
    }


if __name__ == "__main__":
    key = jax.random.PRNGKey(0)
    kx, kp = jax.random.split(key)

    N, C, D, H, W = 2, 8, 8, 8, 8          # S = 512 (multiple of 128)
    hidden = 32

    x = jax.random.normal(kx, (N, C, D, H, W), jnp.float32)
    params = init_params(kp, C, hidden)

    fwd = jax.jit(functools.partial(tadabn3d_forward, params))
    out = fwd(x)
    jax.block_until_ready(out)

    assert out.shape == (N, C, D, H, W), out.shape
    assert bool(jnp.all(jnp.isfinite(out)))

    ref = tadabn3d_reference(params, x)
    max_err = float(jnp.max(jnp.abs(out - ref)))
    assert bool(jnp.allclose(out, ref, rtol=1e-2, atol=1e-2)), max_err

    print("KERNEL_OK")
</pallas_src>

<mosaic_0001>
module attributes {stable_mosaic.version = 11 : i64} {
  func.func @_normalize_kernel(%arg0: i32, %arg1: memref<2x8x512xf32, #tpu.memory_space<vmem>>, %arg2: memref<2x8x1xf32, #tpu.memory_space<vmem>>, %arg3: memref<2x8x1xf32, #tpu.memory_space<vmem>>, %arg4: memref<2x8x512xf32, #tpu.memory_space<vmem>>) attributes {dimension_semantics = [#tpu.dimension_semantics<parallel>], iteration_bounds = array<i64: 1>, scalar_prefetch = 0 : i64, scratch_operands = 0 : i64, tpu.core_type = #tpu.core_type<tc>, window_params = [{transform_indices = @transform_0, window_bounds = array<i64: 2, 8, 512>}, {pipeline_mode = #tpu.pipeline_mode<synchronous>, transform_indices = @transform_1, window_bounds = array<i64: 2, 8, 1>}, {pipeline_mode = #tpu.pipeline_mode<synchronous>, transform_indices = @transform_2, window_bounds = array<i64: 2, 8, 1>}, {transform_indices = @transform_3, window_bounds = array<i64: 2, 8, 512>}]} {
    %c0 = arith.constant 0 : index
    %c0_0 = arith.constant 0 : index
    %c0_1 = arith.constant 0 : index
    %0 = vector.load %arg1[%c0, %c0_0, %c0_1] : memref<2x8x512xf32, #tpu.memory_space<vmem>>, vector<2x8x512xf32>
    %c0_2 = arith.constant 0 : index
    %c0_3 = arith.constant 0 : index
    %c0_4 = arith.constant 0 : index
    %1 = vector.load %arg2[%c0_2, %c0_3, %c0_4] : memref<2x8x1xf32, #tpu.memory_space<vmem>>, vector<2x8x1xf32>
    %2 = vector.broadcast %1 : vector<2x8x1xf32> to vector<2x8x512xf32>
    %3 = arith.mulf %2, %0 : vector<2x8x512xf32>
    %c0_5 = arith.constant 0 : index
    %c0_6 = arith.constant 0 : index
    %c0_7 = arith.constant 0 : index
    %4 = vector.load %arg3[%c0_5, %c0_6, %c0_7] : memref<2x8x1xf32, #tpu.memory_space<vmem>>, vector<2x8x1xf32>
    %5 = vector.broadcast %4 : vector<2x8x1xf32> to vector<2x8x512xf32>
    %6 = arith.addf %3, %5 : vector<2x8x512xf32>
    %c0_8 = arith.constant 0 : index
    %c0_9 = arith.constant 0 : index
    %c0_10 = arith.constant 0 : index
    %7 = vector.load %arg4[%c0_8, %c0_9, %c0_10] : memref<2x8x512xf32, #tpu.memory_space<vmem>>, vector<2x8x512xf32>
    tpu.vector_store %arg4[%c0_8, %c0_9, %c0_10], %6 {strides = array<i32>} : memref<2x8x512xf32, #tpu.memory_space<vmem>>, vector<2x8x512xf32>,
    return
  }
  func.func @transform_0(%arg0: i32) -> (i32, i32, i32) {
    %c0_i32 = arith.constant 0 : i32
    %c0_i32_0 = arith.constant 0 : i32
    %c0_i32_1 = arith.constant 0 : i32
    return %c0_i32, %c0_i32_0, %arg0 : i32, i32, i32
  }
  func.func @transform_1(%arg0: i32) -> (i32, i32, i32) {
    %c0_i32 = arith.constant 0 : i32
    %c0_i32_0 = arith.constant 0 : i32
    %c0_i32_1 = arith.constant 0 : i32
    %c0_i32_2 = arith.constant 0 : i32
    return %c0_i32, %c0_i32_0, %c0_i32_1 : i32, i32, i32
  }
  func.func @transform_2(%arg0: i32) -> (i32, i32, i32) {
    %c0_i32 = arith.constant 0 : i32
    %c0_i32_0 = arith.constant 0 : i32
    %c0_i32_1 = arith.constant 0 : i32
    %c0_i32_2 = arith.constant 0 : i32
    return %c0_i32, %c0_i32_0, %c0_i32_1 : i32, i32, i32
  }
  func.func @transform_3(%arg0: i32) -> (i32, i32, i32) {
    %c0_i32 = arith.constant 0 : i32
    %c0_i32_0 = arith.constant 0 : i32
    %c0_i32_1 = arith.constant 0 : i32
    return %c0_i32, %c0_i32_0, %arg0 : i32, i32, i32
  }
}

module attributes {stable_mosaic.version = 11 : i64} {
  func.func @_stats_params_kernel(%arg0: i32, %arg1: memref<2x8x512xf32, #tpu.memory_space<vmem>>, %arg2: memref<1x8xf32, #tpu.memory_space<vmem>>, %arg3: memref<1x8xf32, #tpu.memory_space<vmem>>, %arg4: memref<8x32xf32, #tpu.memory_space<vmem>>, %arg5: memref<1x32xf32, #tpu.memory_space<vmem>>, %arg6: memref<32x16xf32, #tpu.memory_space<vmem>>, %arg7: memref<1x16xf32, #tpu.memory_space<vmem>>, %arg8: memref<2x8xf32, #tpu.memory_space<vmem>>, %arg9: memref<2x8xf32, #tpu.memory_space<vmem>>, %arg10: memref<2x8xf32, #tpu.memory_space<vmem>>, %arg11: memref<2x8xf32, #tpu.memory_space<vmem>>) attributes {dimension_semantics = [#tpu.dimension_semantics<arbitrary>], iteration_bounds = array<i64: 1>, scalar_prefetch = 0 : i64, scratch_operands = 2 : i64, tpu.core_type = #tpu.core_type<tc>, window_params = [{transform_indices = @transform_0, window_bounds = array<i64: 2, 8, 512>}, {pipeline_mode = #tpu.pipeline_mode<synchronous>, transform_indices = @transform_1, window_bounds = array<i64: 1, 8>}, {pipeline_mode = #tpu.pipeline_mode<synchronous>, transform_indices = @transform_2, window_bounds = array<i64: 1, 8>}, {pipeline_mode = #tpu.pipeline_mode<synchronous>, transform_indices = @transform_3, window_bounds = array<i64: 8, 32>}, {pipeline_mode = #tpu.pipeline_mode<synchronous>, transform_indices = @transform_4, window_bounds = array<i64: 1, 32>}, {pipeline_mode = #tpu.pipeline_mode<synchronous>, transform_indices = @transform_5, window_bounds = array<i64: 32, 16>}, {pipeline_mode = #tpu.pipeline_mode<synchronous>, transform_indices = @transform_6, window_bounds = array<i64: 1, 16>}, {pipeline_mode = #tpu.pipeline_mode<synchronous>, transform_indices = @transform_7, window_bounds = array<i64: 2, 8>}, {pipeline_mode = #tpu.pipeline_mode<synchronous>, transform_indices = @transform_8, window_bounds = array<i64: 2, 8>}]} {
    %c0_i32 = arith.constant 0 : i32
    %0 = arith.cmpi eq, %arg0, %c0_i32 : i32
    %1 = arith.extui %0 : i1 to i32
    %c0_i32_0 = arith.constant 0 : i32
    %2 = arith.cmpi ne, %1, %c0_i32_0 : i32
    scf.if %2 {
      %cst_14 = arith.constant 0.000000e+00 : f32
      %16 = vector.broadcast %cst_14 : f32 to vector<2x8xf32>
      %c0_15 = arith.constant 0 : index
      %c0_16 = arith.constant 0 : index
      %17 = vector.load %arg10[%c0_15, %c0_16] : memref<2x8xf32, #tpu.memory_space<vmem>>, vector<2x8xf32>
      tpu.vector_store %arg10[%c0_15, %c0_16], %16 {strides = array<i32>} : memref<2x8xf32, #tpu.memory_space<vmem>>, vector<2x8xf32>,
      %cst_17 = arith.constant 0.000000e+00 : f32
      %18 = vector.broadcast %cst_17 : f32 to vector<2x8xf32>
      %c0_18 = arith.constant 0 : index
      %c0_19 = arith.constant 0 : index
      %19 = vector.load %arg11[%c0_18, %c0_19] : memref<2x8xf32, #tpu.memory_space<vmem>>, vector<2x8xf32>
      tpu.vector_store %arg11[%c0_18, %c0_19], %18 {strides = array<i32>} : memref<2x8xf32, #tpu.memory_space<vmem>>, vector<2x8xf32>,
    } else {
    }
    %c0 = arith.constant 0 : index
    %c0_1 = arith.constant 0 : index
    %c0_2 = arith.constant 0 : index
    %3 = vector.load %arg1[%c0, %c0_1, %c0_2] : memref<2x8x512xf32, #tpu.memory_space<vmem>>, vector<2x8x512xf32>
    %c0_3 = arith.constant 0 : index
    %c0_4 = arith.constant 0 : index
    %4 = vector.load %arg10[%c0_3, %c0_4] : memref<2x8xf32, #tpu.memory_space<vmem>>, vector<2x8xf32>
    %cst = arith.constant dense<0.000000e+00> : vector<2x8xf32>
    %5 = vector.multi_reduction <add>, %3, %cst [2] : vector<2x8x512xf32> to vector<2x8xf32>
    %6 = arith.addf %4, %5 : vector<2x8xf32>
    %c0_5 = arith.constant 0 : index
    %c0_6 = arith.constant 0 : index
    %7 = vector.load %arg10[%c0_5, %c0_6] : memref<2x8xf32, #tpu.memory_space<vmem>>, vector<2x8xf32>
    tpu.vector_store %arg10[%c0_5, %c0_6], %6 {strides = array<i32>} : memref<2x8xf32, #tpu.memory_space<vmem>>, vector<2x8xf32>,
    %c0_7 = arith.constant 0 : index
    %c0_8 = arith.constant 0 : index
    %8 = vector.load %arg11[%c0_7, %c0_8] : memref<2x8xf32, #tpu.memory_space<vmem>>, vector<2x8xf32>
    %9 = arith.mulf %3, %3 : vector<2x8x512xf32>
    %cst_9 = arith.constant dense<0.000000e+00> : vector<2x8xf32>
    %10 = vector.multi_reduction <add>, %9, %cst_9 [2] : vector<2x8x512xf32> to vector<2x8xf32>
    %11 = arith.addf %8, %10 : vector<2x8xf32>
    %c0_10 = arith.constant 0 : index
    %c0_11 = arith.constant 0 : index
    %12 = vector.load %arg11[%c0_10, %c0_11] : memref<2x8xf32, #tpu.memory_space<vmem>>, vector<2x8xf32>
    tpu.vector_store %arg11[%c0_10, %c0_11], %11 {strides = array<i32>} : memref<2x8xf32, #tpu.memory_space<vmem>>, vector<2x8xf32>,
    %c0_i32_12 = arith.constant 0 : i32
    %13 = arith.cmpi eq, %arg0, %c0_i32_12 : i32
    %14 = arith.extui %13 : i1 to i32
    %c0_i32_13 = arith.constant 0 : i32
    %15 = arith.cmpi ne, %14, %c0_i32_13 : i32
    scf.if %15 {
      %c0_14 = arith.constant 0 : index
      %c0_15 = arith.constant 0 : index
      %16 = vector.load %arg10[%c0_14, %c0_15] : memref<2x8xf32, #tpu.memory_space<vmem>>, vector<2x8xf32>
      %cst_16 = arith.constant 0.001953125 : f32
      %17 = vector.broadcast %cst_16 : f32 to vector<2x8xf32>
      %18 = arith.mulf %16, %17 : vector<2x8xf32>
      %cst_17 = arith.constant dense<0.000000e+00> : vector<8xf32>
      %19 = vector.multi_reduction <add>, %16, %cst_17 [0] : vector<2x8xf32> to vector<8xf32>
      %20 = vector.shape_cast %19 : vector<8xf32> to vector<1x8xf32>
      %cst_18 = arith.constant 9.765625E-4 : f32
      %21 = vector.broadcast %cst_18 : f32 to vector<1x8xf32>
      %22 = arith.mulf %20, %21 : vector<1x8xf32>
      %c0_19 = arith.constant 0 : index
      %c0_20 = arith.constant 0 : index
      %23 = vector.load %arg11[%c0_19, %c0_20] : memref<2x8xf32, #tpu.memory_space<vmem>>, vector<2x8xf32>
      %cst_21 = arith.constant dense<0.000000e+00> : vector<8xf32>
      %24 = vector.multi_reduction <add>, %23, %cst_21 [0] : vector<2x8xf32> to vector<8xf32>
      %25 = vector.shape_cast %24 : vector<8xf32> to vector<1x8xf32>
      %cst_22 = arith.constant 9.765625E-4 : f32
      %26 = vector.broadcast %cst_22 : f32 to vector<1x8xf32>
      %27 = arith.mulf %25, %26 : vector<1x8xf32>
      %28 = arith.mulf %22, %22 : vector<1x8xf32>
      %29 = arith.subf %27, %28 : vector<1x8xf32>
      %cst_23 = arith.constant 0.000000e+00 : f32
      %30 = vector.broadcast %cst_23 : f32 to vector<1x8xf32>
      %31 = arith.maximumf %29, %30 : vector<1x8xf32>
      %cst_24 = arith.constant 9.99999974E-6 : f32
      %32 = vector.broadcast %cst_24 : f32 to vector<1x8xf32>
      %33 = arith.addf %31, %32 : vector<1x8xf32>
      %34 = math.rsqrt %33 : vector<1x8xf32>
      %c0_25 = arith.constant 0 : index
      %c0_26 = arith.constant 0 : index
      %35 = vector.load %arg4[%c0_25, %c0_26] : memref<8x32xf32, #tpu.memory_space<vmem>>, vector<8x32xf32>
      %cst_27 = arith.constant dense<0.000000e+00> : vector<2x32xf32>
      %36 = tpu.matmul %18, %35, %cst_27 {dimension_numbers = #tpu.dot_dimension_numbers<[1], [0], [0], [1], [0, 0, 1, 1], [], []>} : vector<2x8xf32>, vector<8x32xf32>, vector<2x32xf32> -> vector<2x32xf32>
      %c0_28 = arith.constant 0 : index
      %c0_29 = arith.constant 0 : index
      %37 = vector.load %arg5[%c0_28, %c0_29] : memref<1x32xf32, #tpu.memory_space<vmem>>, vector<1x32xf32>
      %38 = vector.broadcast %37 : vector<1x32xf32> to vector<2x32xf32>
      %39 = arith.addf %36, %38 : vector<2x32xf32>
      %cst_30 = arith.constant 0.000000e+00 : f32
      %40 = vector.broadcast %cst_30 : f32 to vector<2x32xf32>
      %41 = arith.maximumf %39, %40 : vector<2x32xf32>
      %c0_31 = arith.constant 0 : index
      %c0_32 = arith.constant 0 : index
      %42 = vector.load %arg6[%c0_31, %c0_32] : memref<32x16xf32, #tpu.memory_space<vmem>>, vector<32x16xf32>
      %cst_33 = arith.constant dense<0.000000e+00> : vector<2x16xf32>
      %43 = tpu.matmul %41, %42, %cst_33 {dimension_numbers = #tpu.dot_dimension_numbers<[1], [0], [0], [1], [0, 0, 1, 1], [], []>} : vector<2x32xf32>, vector<32x16xf32>, vector<2x16xf32> -> vector<2x16xf32>
      %c0_34 = arith.constant 0 : index
      %c0_35 = arith.constant 0 : index
      %44 = vector.load %arg7[%c0_34, %c0_35] : memref<1x16xf32, #tpu.memory_space<vmem>>, vector<1x16xf32>
      %45 = vector.broadcast %44 : vector<1x16xf32> to vector<2x16xf32>
      %46 = arith.addf %43, %45 : vector<2x16xf32>
      %47 = math.tanh %46 : vector<2x16xf32>
      %48 = vector.extract_strided_slice %47 {offsets = [0, 0], sizes = [2, 8], strides = [1, 1]} : vector<2x16xf32> to vector<2x8xf32>
      %49 = vector.extract_strided_slice %47 {offsets = [0, 8], sizes = [2, 8], strides = [1, 1]} : vector<2x16xf32> to vector<2x8xf32>
      %c0_36 = arith.constant 0 : index
      %c0_37 = arith.constant 0 : index
      %50 = vector.load %arg2[%c0_36, %c0_37] : memref<1x8xf32, #tpu.memory_space<vmem>>, vector<1x8xf32>
      %c0_38 = arith.constant 0 : index
      %c0_39 = arith.constant 0 : index
      %51 = vector.load %arg3[%c0_38, %c0_39] : memref<1x8xf32, #tpu.memory_space<vmem>>, vector<1x8xf32>
      %52 = vector.broadcast %50 : vector<1x8xf32> to vector<2x8xf32>
      %53 = arith.mulf %52, %49 : vector<2x8xf32>
      %54 = vector.broadcast %34 : vector<1x8xf32> to vector<2x8xf32>
      %55 = arith.mulf %53, %54 : vector<2x8xf32>
      %c0_40 = arith.constant 0 : index
      %c0_41 = arith.constant 0 : index
      %56 = vector.load %arg8[%c0_40, %c0_41] : memref<2x8xf32, #tpu.memory_space<vmem>>, vector<2x8xf32>
      tpu.vector_store %arg8[%c0_40, %c0_41], %55 {strides = array<i32>} : memref<2x8xf32, #tpu.memory_space<vmem>>, vector<2x8xf32>,
      %57 = vector.broadcast %22 : vector<1x8xf32> to vector<2x8xf32>
      %58 = arith.mulf %49, %57 : vector<2x8xf32>
      %59 = vector.broadcast %34 : vector<1x8xf32> to vector<2x8xf32>
      %60 = arith.mulf %58, %59 : vector<2x8xf32>
      %61 = arith.subf %48, %60 : vector<2x8xf32>
      %62 = vector.broadcast %50 : vector<1x8xf32> to vector<2x8xf32>
      %63 = arith.mulf %62, %61 : vector<2x8xf32>
      %64 = vector.broadcast %51 : vector<1x8xf32> to vector<2x8xf32>
      %65 = arith.addf %63, %64 : vector<2x8xf32>
      %c0_42 = arith.constant 0 : index
      %c0_43 = arith.constant 0 : index
      %66 = vector.load %arg9[%c0_42, %c0_43] : memref<2x8xf32, #tpu.memory_space<vmem>>, vector<2x8xf32>
      tpu.vector_store %arg9[%c0_42, %c0_43], %65 {strides = array<i32>} : memref<2x8xf32, #tpu.memory_space<vmem>>, vector<2x8xf32>,
    } else {
    }
    return
  }
  func.func @transform_0(%arg0: i32) -> (i32, i32, i32) {
    %c0_i32 = arith.constant 0 : i32
    %c0_i32_0 = arith.constant 0 : i32
    %c0_i32_1 = arith.constant 0 : i32
    return %c0_i32, %c0_i32_0, %arg0 : i32, i32, i32
  }
  func.func @transform_1(%arg0: i32) -> (i32, i32) {
    %c0_i32 = arith.constant 0 : i32
    %c0_i32_0 = arith.constant 0 : i32
    %c0_i32_1 = arith.constant 0 : i32
    return %c0_i32, %c0_i32_0 : i32, i32
  }
  func.func @transform_2(%arg0: i32) -> (i32, i32) {
    %c0_i32 = arith.constant 0 : i32
    %c0_i32_0 = arith.constant 0 : i32
    %c0_i32_1 = arith.constant 0 : i32
    return %c0_i32, %c0_i32_0 : i32, i32
  }
  func.func @transform_3(%arg0: i32) -> (i32, i32) {
    %c0_i32 = arith.constant 0 : i32
    %c0_i32_0 = arith.constant 0 : i32
    %c0_i32_1 = arith.constant 0 : i32
    return %c0_i32, %c0_i32_0 : i32, i32
  }
  func.func @transform_4(%arg0: i32) -> (i32, i32) {
    %c0_i32 = arith.constant 0 : i32
    %c0_i32_0 = arith.constant 0 : i32
    %c0_i32_1 = arith.constant 0 : i32
    return %c0_i32, %c0_i32_0 : i32, i32
  }
  func.func @transform_5(%arg0: i32) -> (i32, i32) {
    %c0_i32 = arith.constant 0 : i32
    %c0_i32_0 = arith.constant 0 : i32
    %c0_i32_1 = arith.constant 0 : i32
    return %c0_i32, %c0_i32_0 : i32, i32
  }
  func.func @transform_6(%arg0: i32) -> (i32, i32) {
    %c0_i32 = arith.constant 0 : i32
    %c0_i32_0 = arith.constant 0 : i32
    %c0_i32_1 = arith.constant 0 : i32
    return %c0_i32, %c0_i32_0 : i32, i32
  }
  func.func @transform_7(%arg0: i32) -> (i32, i32) {
    %c0_i32 = arith.constant 0 : i32
    %c0_i32_0 = arith.constant 0 : i32
    %c0_i32_1 = arith.constant 0 : i32
    return %c0_i32, %c0_i32_0 : i32, i32
  }
  func.func @transform_8(%arg0: i32) -> (i32, i32) {
    %c0_i32 = arith.constant 0 : i32
    %c0_i32_0 = arith.constant 0 : i32
    %c0_i32_1 = arith.constant 0 : i32
    return %c0_i32, %c0_i32_0 : i32, i32
  }
}

</mosaic_0001>

<llo_original>
// kernel: tadabn3d_forward.3
$region0: #{tadabn3d_forward.3}
  #allocation0 [shape = 'u32[]', space=smem, size = 0x4, offset = 0x4, fixed_abs, tag = 'smem constant byte address 0x4 - core index']
  #allocation1 [shape = 'u32[144,128]{1,0:T(1,128)}', space=vmem, size = 0x12000, scoped, tag = 'internal scratch']
  %s0 = inlined_call_operand.vmem [shape: f32[2,8,512], index: 0, kind: input, shape index: {}]
  %s1 = inlined_call_operand.vmem [shape: f32[2,8,1], index: 1, kind: input, shape index: {}]
  %s2 = inlined_call_operand.vmem [shape: f32[2,8,1], index: 2, kind: input, shape index: {}]
  %s3 = inlined_call_operand.vmem [shape: f32[2,8,512], index: 3, kind: output, shape index: {}]
  %s4 = sld [smem:[#allocation0]]
  $region22: #{tadabn3d_forward.3} parent=0
    _
  %s6 = ssub.s32 1, %s4
  %s7 = scalar_select 0, %s6, %s4
  // Predicated region
  $region2: #{tadabn3d_forward.3} parent=0 // pred_check
    _
  $region3: #{tadabn3d_forward.3} parent=0 // pred_check_branch
    %9 = sbr.rel (0) target = $region5
  $region4: #{tadabn3d_forward.3} parent=0 // pred_region
    _
  $region5: #{tadabn3d_forward.3} parent=0 // pred_fallthru
    _
  // Predicated region
  $region6: #{tadabn3d_forward.3} parent=0 // pred_check
    _
  $region7: #{tadabn3d_forward.3} parent=0 // pred_check_branch
    %11 = sbr.rel (0) target = $region9
  $region8: #{tadabn3d_forward.3} parent=0 // pred_region
    _
  $region9: #{tadabn3d_forward.3} parent=0 // pred_fallthru
    _
  // Predicated region
  $region10: #{tadabn3d_forward.3} parent=0 // pred_check
    _
  $region11: #{tadabn3d_forward.3} parent=0 // pred_check_branch
    %13 = sbr.rel (0) target = $region13
  $region12: #{tadabn3d_forward.3} parent=0 // pred_region
    _
  $region13: #{tadabn3d_forward.3} parent=0 // pred_fallthru
    _
  %v14 = vld [vmem:[%s0] sm:$0xff]
  %v15 = vld [vmem:[%s0 + $0x8] sm:$0xff]
  %v16 = vld [vmem:[%s0 + $0x10] sm:$0xff]
  %v17 = vld [vmem:[%s0 + $0x18] sm:$0xff]
  %v18 = vld [vmem:[%s0 + $0x20] sm:$0xff]
  %v19 = vld [vmem:[%s0 + $0x28] sm:$0xff]
  %v20 = vld [vmem:[%s0 + $0x30] sm:$0xff]
  %v21 = vld [vmem:[%s0 + $0x38] sm:$0xff]
  %v22 = vld [vmem:[%s1] sm:$0xff]
  %v23 = vld [vmem:[%s1 + $0x8] sm:$0xff]
  %25 = vset.pattern.permute.xlu0 0
  %26 = vperm.xlu0 %25, %v22
  %v27 = vpop.permute.xlu0 %26
  %30 = vset.pattern.permute.xlu0 0
  %31 = vperm.xlu0 %30, %v23
  %v32 = vpop.permute.xlu0 %31
  %v34 = vmul.f32 %v27, %v14
  %v35 = vmul.f32 %v27, %v15
  %v36 = vmul.f32 %v27, %v16
  %v37 = vmul.f32 %v27, %v17
  %v38 = vmul.f32 %v32, %v18
  %v39 = vmul.f32 %v32, %v19
  %v40 = vmul.f32 %v32, %v20
  %v41 = vmul.f32 %v32, %v21
  %v42 = vld [vmem:[%s2] sm:$0xff]
  %v43 = vld [vmem:[%s2 + $0x8] sm:$0xff]
  %45 = vset.pattern.permute.xlu0 0
  %46 = vperm.xlu0 %45, %v42
  %v47 = vpop.permute.xlu0 %46
  %50 = vset.pattern.permute.xlu0 0
  %51 = vperm.xlu0 %50, %v43
  %v52 = vpop.permute.xlu0 %51
  %v54 = vadd.f32 %v34, %v47
  %v55 = vadd.f32 %v35, %v47
  %v56 = vadd.f32 %v36, %v47
  %v57 = vadd.f32 %v37, %v47
  %v58 = vadd.f32 %v38, %v52
  %v59 = vadd.f32 %v39, %v52
  %v60 = vadd.f32 %v40, %v52
  %v61 = vadd.f32 %v41, %v52
  %62 = vst [vmem:[%s3] sm:$0xff] %v54
  %63 = vst [vmem:[%s3 + $0x8] sm:$0xff] %v55
  %64 = vst [vmem:[%s3 + $0x10] sm:$0xff] %v56
  %65 = vst [vmem:[%s3 + $0x18] sm:$0xff] %v57
  %66 = vst [vmem:[%s3 + $0x20] sm:$0xff] %v58
  %67 = vst [vmem:[%s3 + $0x28] sm:$0xff] %v59
  %68 = vst [vmem:[%s3 + $0x30] sm:$0xff] %v60
  %69 = vst [vmem:[%s3 + $0x38] sm:$0xff] %v61
  // Predicated region
  $region14: #{tadabn3d_forward.3} parent=0 // pred_check
    _
  $region15: #{tadabn3d_forward.3} parent=0 // pred_check_branch
    %71 = sbr.rel (0) target = $region17
  $region16: #{tadabn3d_forward.3} parent=0 // pred_region
    _
  $region17: #{tadabn3d_forward.3} parent=0 // pred_fallthru
    _
  // Predicated region
  $region18: #{tadabn3d_forward.3} parent=0 // pred_check
    _
  $region19: #{tadabn3d_forward.3} parent=0 // pred_check_branch
    %73 = sbr.rel (0) target = $region21
  $region20: #{tadabn3d_forward.3} parent=0 // pred_region
    _
  $region21: #{tadabn3d_forward.3} parent=0 // pred_fallthru
    _

// kernel: tadabn3d_forward.2
$region0: #{tadabn3d_forward.2}
  #allocation0 [shape = 'u32[]', space=smem, size = 0x4, offset = 0x4, fixed_abs, tag = 'smem constant byte address 0x4 - core index']
  #allocation1 [shape = 'u32[144,128]{1,0:T(1,128)}', space=vmem, size = 0x12000, scoped, tag = 'internal scratch']
  #allocation2 [shape = 'f32[2,8]{1,0:T(2,128)}', space=vmem, size = 0x400, scoped, tag = 'scratch operand']
  #allocation3 [shape = 'f32[2,8]{1,0:T(2,128)}', space=vmem, size = 0x400, scoped, tag = 'scratch operand']
  %s0 = inlined_call_operand.vmem [shape: f32[2,8,512], index: 0, kind: input, shape index: {}]
  %s1 = inlined_call_operand.vmem [shape: f32[1,8], index: 1, kind: input, shape index: {}]
  %s2 = inlined_call_operand.vmem [shape: f32[1,8], index: 2, kind: input, shape index: {}]
  %s3 = inlined_call_operand.vmem [shape: f32[8,32], index: 3, kind: input, shape index: {}]
  %s4 = inlined_call_operand.vmem [shape: f32[1,32], index: 4, kind: input, shape index: {}]
  %s5 = inlined_call_operand.vmem [shape: f32[32,16], index: 5, kind: input, shape index: {}]
  %s6 = inlined_call_operand.vmem [shape: f32[1,16], index: 6, kind: input, shape index: {}]
  %s7 = inlined_call_operand.vmem [shape: f32[2,8], index: 7, kind: output, shape index: {0}]
  %s8 = inlined_call_operand.vmem [shape: f32[2,8], index: 8, kind: output, shape index: {1}]
  %9 = xla_tuple %s7, %s8
  %s10 = sld [smem:[#allocation0]]
  $region54: #{tadabn3d_forward.2} parent=0
    _
  %s12 = ssub.s32 1, %s10
  %s13 = scalar_select 0, %s12, %s10
  // Predicated region
  $region2: #{tadabn3d_forward.2} parent=0 // pred_check
    _
  $region3: #{tadabn3d_forward.2} parent=0 // pred_check_branch
    %15 = sbr.rel (0) target = $region5
  $region4: #{tadabn3d_forward.2} parent=0 // pred_region
    _
  $region5: #{tadabn3d_forward.2} parent=0 // pred_fallthru
    _
  // Predicated region
  $region6: #{tadabn3d_forward.2} parent=0 // pred_check
    _
  $region7: #{tadabn3d_forward.2} parent=0 // pred_check_branch
    %17 = sbr.rel (0) target = $region9
  $region8: #{tadabn3d_forward.2} parent=0 // pred_region
    _
  $region9: #{tadabn3d_forward.2} parent=0 // pred_fallthru
    _
  // Predicated region
  $region10: #{tadabn3d_forward.2} parent=0 // pred_check
    _
  $region11: #{tadabn3d_forward.2} parent=0 // pred_check_branch
    %19 = sbr.rel (0) target = $region13
  $region12: #{tadabn3d_forward.2} parent=0 // pred_region
    _
  $region13: #{tadabn3d_forward.2} parent=0 // pred_fallthru
    _
  // Predicated region
  $region14: #{tadabn3d_forward.2} parent=0 // pred_check
    _
  $region15: #{tadabn3d_forward.2} parent=0 // pred_check_branch
    %21 = sbr.rel (0) target = $region17
  $region16: #{tadabn3d_forward.2} parent=0 // pred_region
    _
  $region17: #{tadabn3d_forward.2} parent=0 // pred_fallthru
    _
  // Predicated region
  $region18: #{tadabn3d_forward.2} parent=0 // pred_check
    _
  $region19: #{tadabn3d_forward.2} parent=0 // pred_check_branch
    %23 = sbr.rel (0) target = $region21
  $region20: #{tadabn3d_forward.2} parent=0 // pred_region
    _
  $region21: #{tadabn3d_forward.2} parent=0 // pred_fallthru
    _
  // Predicated region
  $region22: #{tadabn3d_forward.2} parent=0 // pred_check
    _
  $region23: #{tadabn3d_forward.2} parent=0 // pred_check_branch
    %25 = sbr.rel (0) target = $region25
  $region24: #{tadabn3d_forward.2} parent=0 // pred_region
    _
  $region25: #{tadabn3d_forward.2} parent=0 // pred_fallthru
    _
  // Predicated region
  $region26: #{tadabn3d_forward.2} parent=0 // pred_check
    _
  $region27: #{tadabn3d_forward.2} parent=0 // pred_check_branch
    %27 = sbr.rel (0) target = $region29
  $region28: #{tadabn3d_forward.2} parent=0 // pred_region
    _
  $region29: #{tadabn3d_forward.2} parent=0 // pred_fallthru
    _
  %p28 = scmp.eq.s32.totalorder 0, 0
  // Predicated region
  $region30: #{tadabn3d_forward.2} parent=0 // pred_check
    %p29 = pneg %p28
  $region31: #{tadabn3d_forward.2} parent=0 // pred_check_branch
    %31 = sbr.rel (%p29) target = $region33
  $region32: #{tadabn3d_forward.2} parent=0 // pred_region
    %vm32 = vcmask 58368
    %33 = vst.msk [vmem:[#allocation2] sm:$0x3] %vm32, 0.0
    %34 = vst.msk [vmem:[#allocation3] sm:$0x3] %vm32, 0.0
  $region33: #{tadabn3d_forward.2} parent=0 // pred_fallthru
    _
  %v35 = vld [vmem:[%s0] sm:$0xff]
  %v36 = vld [vmem:[%s0 + $0x8] sm:$0xff]
  %v37 = vld [vmem:[%s0 + $0x10] sm:$0xff]
  %v38 = vld [vmem:[%s0 + $0x18] sm:$0xff]
  %v39 = vld [vmem:[%s0 + $0x20] sm:$0xff]
  %v40 = vld [vmem:[%s0 + $0x28] sm:$0xff]
  %v41 = vld [vmem:[%s0 + $0x30] sm:$0xff]
  %v42 = vld [vmem:[%s0 + $0x38] sm:$0xff]
  %v43 = vld [vmem:[#allocation2] sm:$0x3]
  %v44 = vadd.f32 %v35, %v36
  %v45 = vadd.f32 %v44, %v37
  %v46 = vadd.f32 %v45, %v38
  %47 = vadd.xlane.f32.xlu0 %v46
  %v48 = vpop.xlane.xlu0 %47
  %v49 = vadd.f32 %v39, %v40
  %v50 = vadd.f32 %v49, %v41
  %v51 = vadd.f32 %v50, %v42
  %52 = vadd.xlane.f32.xlu0 %v51
  %v53 = vpop.xlane.xlu0 %52
  %v56 = vlaneseq
  %v57 = vand.u32 %v56, 127
  %v58 = vlaneseq
  %v59 = vshrl.u32 %v58, 7
  %v60 = vsub.s32 %v57, %v59
  %v61 = vrot.slane %v48, %v60
  %v62 = vlaneseq
  %v63 = vshrl.u32 %v62, 7
  %v64 = vsub.s32 %v57, %v63
  %v65 = vrot.slane %v53, %v64
  %vm66 = vcmask 1041409
  %v67 = vsel %vm66, %v65, %v61
  %v69 = vadd.f32 %v43, %v67
  %vm70 = vcmask 58368
  %71 = vst.msk [vmem:[#allocation2] sm:$0x3] %vm70, %v69
  %v72 = vld [vmem:[#allocation3] sm:$0x3]
  %v73 = vmul.f32 %v35, %v35
  %v74 = vmul.f32 %v36, %v36
  %v75 = vmul.f32 %v37, %v37
  %v76 = vmul.f32 %v38, %v38
  %v77 = vmul.f32 %v39, %v39
  %v78 = vmul.f32 %v40, %v40
  %v79 = vmul.f32 %v41, %v41
  %v80 = vmul.f32 %v42, %v42
  %v81 = vadd.f32 %v73, %v74
  %v82 = vadd.f32 %v81, %v75
  %v83 = vadd.f32 %v82, %v76
  %84 = vadd.xlane.f32.xlu0 %v83
  %v85 = vpop.xlane.xlu0 %84
  %v86 = vadd.f32 %v77, %v78
  %v87 = vadd.f32 %v86, %v79
  %v88 = vadd.f32 %v87, %v80
  %89 = vadd.xlane.f32.xlu0 %v88
  %v90 = vpop.xlane.xlu0 %89
  %v93 = vlaneseq
  %v94 = vshrl.u32 %v93, 7
  %v95 = vsub.s32 %v57, %v94
  %v96 = vrot.slane %v85, %v95
  %v97 = vlaneseq
  %v98 = vshrl.u32 %v97, 7
  %v99 = vsub.s32 %v57, %v98
  %v100 = vrot.slane %v90, %v99
  %v101 = vsel %vm66, %v100, %v96
  %v103 = vadd.f32 %v72, %v101
  %104 = vst.msk [vmem:[#allocation3] sm:$0x3] %vm70, %v103
  // Predicated region
  $region34: #{tadabn3d_forward.2} parent=0 // pred_check
    %p105 = pneg %p28
  $region35: #{tadabn3d_forward.2} parent=0 // pred_check_branch
    %107 = sbr.rel (%p105) target = $region37
  $region36: #{tadabn3d_forward.2} parent=0 // pred_region
    %v108 = vld [vmem:[#allocation2] sm:$0x3]
    %v109 = vmul.f32 %v108, 0.001953125
    %v110 = vsel %vm70, %v108, 0.0
    %v111 = vrot.slane %v110, 4
    %v112 = vadd.f32 %v110, %v111
    %v113 = vrot.slane %v112, 2
    %v114 = vadd.f32 %v112, %v113
    %v115 = vrot.slane %v114, 1
    %v116 = vadd.f32 %v114, %v115
    %v117 = vmul.f32 %v116, 0.0009765625
    %v118 = vld [vmem:[#allocation3] sm:$0x3]
    %v119 = vsel %vm70, %v118, 0.0
    %v120 = vrot.slane %v119, 4
    %v121 = vadd.f32 %v119, %v120
    %v122 = vrot.slane %v121, 2
    %v123 = vadd.f32 %v121, %v122
    %v124 = vrot.slane %v123, 1
    %v125 = vadd.f32 %v123, %v124
    %v126 = vmul.f32 %v125, 0.0009765625
    %v127 = vmul.f32 %v117, %v117
    %v128 = vsub.f32 %v126, %v127
    %v129 = vmax.f32 %v128, 0.0
    %v130 = vadd.f32 %v129, 1e-05
    %v131 = vrsqrt.pop %v130
    %v132 = vld [vmem:[%s3] sm:$0xff]
    %v133 = vld [vmem:[%s4] sm:$0x1]
    %v135 = vlaneseq
    %v136 = vshrl.u32 %v135, 7
    %v137 = vsub.s32 0, %v136
    %v138 = vrot.slane %v133, %v137
    %vm140 = vcmask 64512
    %v142 = vsel %vm140, %v109, 0
    %144 = vmatprep.subr.mxu0 0.0
    %145 = vmatpush1.msra.mxu0 0.0
    %146 = vmatprep.subr.mxu0 0.0
    %147 = vmatpush1.msra.mxu0 0.0
    %148 = vmatprep.subr.mxu0 0.0
    %149 = vmatpush1.msra.mxu0 0.0
    %150 = vmatprep.subr.mxu0 0.0
    %151 = vmatpush1.msra.mxu0 0.0
    %152 = vmatprep.subr.mxu0 0.0
    %153 = vmatpush1.msra.mxu0 0.0
    %154 = vmatprep.subr.mxu0 0.0
    %155 = vmatpush1.msra.mxu0 0.0
    %156 = vmatprep.subr.mxu0 0.0
    %157 = vmatpush1.msra.mxu0 0.0
    %158 = vmatprep.subr.mxu0 0.0
    %159 = vmatpush1.msra.mxu0 0.0
    %160 = vmatprep.subr.mxu0 0.0
    %161 = vmatpush1.msra.mxu0 0.0
    %162 = vmatprep.subr.mxu0 0.0
    %163 = vmatpush1.msra.mxu0 0.0
    %164 = vmatprep.subr.mxu0 0.0
    %165 = vmatpush1.msra.mxu0 0.0
    %166 = vmatprep.subr.mxu0 0.0
    %167 = vmatpush1.msra.mxu0 0.0
    %168 = vmatprep.subr.mxu0 0.0
    %169 = vmatpush1.msra.mxu0 0.0
    %170 = vmatprep.subr.mxu0 0.0
    %171 = vmatpush1.msra.mxu0 0.0
    %172 = vmatprep.subr.mxu0 0.0
    %173 = vmatpush1.msra.mxu0 0.0
    %174 = vmatprep.subr.mxu0 0.0
    %175 = vmatpush1.msra.mxu0 %v132
    %176 = vmatprep.subr.mxu0 0.0
    %177 = vmatpush2.msra.mxu0 0.0
    %178 = vmatprep.subr.mxu0 0.0
    %179 = vmatpush2.msra.mxu0 0.0
    %180 = vmatprep.subr.mxu0 0.0
    %181 = vmatpush2.msra.mxu0 0.0
    %182 = vmatprep.subr.mxu0 0.0
    %183 = vmatpush2.msra.mxu0 0.0
    %184 = vmatprep.subr.mxu0 0.0
    %185 = vmatpush2.msra.mxu0 0.0
    %186 = vmatprep.subr.mxu0 0.0
    %187 = vmatpush2.msra.mxu0 0.0
    %188 = vmatprep.subr.mxu0 0.0
    %189 = vmatpush2.msra.mxu0 0.0
    %190 = vmatprep.subr.mxu0 0.0
    %191 = vmatpush2.msra.mxu0 0.0
    %192 = vmatprep.subr.mxu0 0.0
    %193 = vmatpush2.msra.mxu0 0.0
    %194 = vmatprep.subr.mxu0 0.0
    %195 = vmatpush2.msra.mxu0 0.0
    %196 = vmatprep.subr.mxu0 0.0
    %197 = vmatpush2.msra.mxu0 0.0
    %198 = vmatprep.subr.mxu0 0.0
    %199 = vmatpush2.msra.mxu0 0.0
    %200 = vmatprep.subr.mxu0 0.0
    %201 = vmatpush2.msra.mxu0 0.0
    %202 = vmatprep.subr.mxu0 0.0
    %203 = vmatpush2.msra.mxu0 0.0
    %204 = vmatprep.subr.mxu0 0.0
    %205 = vmatpush2.msra.mxu0 0.0
    %206 = vmatprep.subr.mxu0 0.0
    %207 = vmatpush2.msra.mxu0 0.0
    %208 = vmatprep.mubr.f32.mxu0 0.0
    %209 = vmatmul.mubr.f32.gmra.mxu0 %v142
    %v210 = vpop.f32.mrf.mxu0
    %v211 = vadd.f32 %v138, %v210
    %v212 = vpop.f32.mrf.mxu0
    %213 = vdwg.mxu0
    %v214 = vmax.f32 %v211, 0.0
    %v215 = vld [vmem:[%s5] sm:$0xff]
    %v216 = vld [vmem:[%s5 + $0x8] sm:$0xff]
    %v217 = vld [vmem:[%s5 + $0x10] sm:$0xff]
    %v218 = vld [vmem:[%s5 + $0x18] sm:$0xff]
    %v219 = vld [vmem:[%s6] sm:$0x1]
    %v221 = vlaneseq
    %v222 = vshrl.u32 %v221, 7
    %v223 = vsub.s32 0, %v222
    %v224 = vrot.slane %v219, %v223
    %vm226 = vcmask 261120
    %v228 = vsel %vm226, %v214, 0
    %230 = vmatprep.subr.mxu0 0.0
    %231 = vmatpush1.msra.mxu0 0.0
    %232 = vmatprep.subr.mxu0 0.0
    %233 = vmatpush1.msra.mxu0 0.0
    %234 = vmatprep.subr.mxu0 0.0
    %235 = vmatpush1.msra.mxu0 0.0
    %236 = vmatprep.subr.mxu0 0.0
    %237 = vmatpush1.msra.mxu0 0.0
    %238 = vmatprep.subr.mxu0 0.0
    %239 = vmatpush1.msra.mxu0 0.0
    %240 = vmatprep.subr.mxu0 0.0
    %241 = vmatpush1.msra.mxu0 0.0
    %242 = vmatprep.subr.mxu0 0.0
    %243 = vmatpush1.msra.mxu0 0.0
    %244 = vmatprep.subr.mxu0 0.0
    %245 = vmatpush1.msra.mxu0 0.0
    %246 = vmatprep.subr.mxu0 0.0
    %247 = vmatpush1.msra.mxu0 0.0
    %248 = vmatprep.subr.mxu0 0.0
    %249 = vmatpush1.msra.mxu0 0.0
    %250 = vmatprep.subr.mxu0 0.0
    %251 = vmatpush1.msra.mxu0 0.0
    %252 = vmatprep.subr.mxu0 0.0
    %253 = vmatpush1.msra.mxu0 0.0
    %254 = vmatprep.subr.mxu0 0.0
    %255 = vmatpush1.msra.mxu0 %v218
    %256 = vmatprep.subr.mxu0 0.0
    %257 = vmatpush1.msra.mxu0 %v217
    %258 = vmatprep.subr.mxu0 0.0
    %259 = vmatpush1.msra.mxu0 %v216
    %260 = vmatprep.subr.mxu0 0.0
    %261 = vmatpush1.msra.mxu0 %v215
    %262 = vmatprep.subr.mxu0 0.0
    %263 = vmatpush2.msra.mxu0 0.0
    %264 = vmatprep.subr.mxu0 0.0
    %265 = vmatpush2.msra.mxu0 0.0
    %266 = vmatprep.subr.mxu0 0.0
    %267 = vmatpush2.msra.mxu0 0.0
    %268 = vmatprep.subr.mxu0 0.0
    %269 = vmatpush2.msra.mxu0 0.0
    %270 = vmatprep.subr.mxu0 0.0
    %271 = vmatpush2.msra.mxu0 0.0
    %272 = vmatprep.subr.mxu0 0.0
    %273 = vmatpush2.msra.mxu0 0.0
    %274 = vmatprep.subr.mxu0 0.0
    %275 = vmatpush2.msra.mxu0 0.0
    %276 = vmatprep.subr.mxu0 0.0
    %277 = vmatpush2.msra.mxu0 0.0
    %278 = vmatprep.subr.mxu0 0.0
    %279 = vmatpush2.msra.mxu0 0.0
    %280 = vmatprep.subr.mxu0 0.0
    %281 = vmatpush2.msra.mxu0 0.0
    %282 = vmatprep.subr.mxu0 0.0
    %283 = vmatpush2.msra.mxu0 0.0
    %284 = vmatprep.subr.mxu0 0.0
    %285 = vmatpush2.msra.mxu0 0.0
    %286 = vmatprep.subr.mxu0 0.0
    %287 = vmatpush2.msra.mxu0 0.0
    %288 = vmatprep.subr.mxu0 0.0
    %289 = vmatpush2.msra.mxu0 0.0
    %290 = vmatprep.subr.mxu0 0.0
    %291 = vmatpush2.msra.mxu0 0.0
    %292 = vmatprep.subr.mxu0 0.0
    %293 = vmatpush2.msra.mxu0 0.0
    %294 = vmatprep.mubr.f32.mxu0 0.0
    %295 = vmatmul.mubr.f32.gmra.mxu0 %v228
    %v296 = vpop.f32.mrf.mxu0
    %v297 = vadd.f32 %v224, %v296
    %v298 = vpop.f32.mrf.mxu0
    %299 = vdwg.mxu0
    %v300 = vtanh.pop %v297
    %v301 = vld [vmem:[%s1] sm:$0x1]
    %v302 = vld [vmem:[%s2] sm:$0x1]
    %v304 = vlaneseq
    %v305 = vshrl.u32 %v304, 7
    %v306 = vsub.s32 0, %v305
    %v307 = vrot.slane %v301, %v306
    %310 = vrot.lane.b32.xlu0 %v300, 120
    %v311 = vpop.permute.xlu0 %310
    %v313 = vmul.f32 %v307, %v311
    %v314 = vmul.f32 %v313, %v131
    %315 = vst.msk [vmem:[%s7] sm:$0x3] %vm70, %v314
    %317 = vrot.lane.b32.xlu0 %v117, 8
    %v318 = vpop.permute.xlu0 %317
    %v320 = vmul.f32 %v300, %v318
    %322 = vrot.lane.b32.xlu0 %v131, 8
    %v323 = vpop.permute.xlu0 %322
    %v325 = vmul.f32 %v320, %v323
    %327 = vrot.lane.b32.xlu0 %v325, 120
    %v328 = vpop.permute.xlu0 %327
    %v330 = vsub.f32 %v300, %v328
    %v331 = vmul.f32 %v307, %v330
    %v333 = vlaneseq
    %v334 = vshrl.u32 %v333, 7
    %v335 = vsub.s32 0, %v334
    %v336 = vrot.slane %v302, %v335
    %v338 = vadd.f32 %v331, %v336
    %339 = vst.msk [vmem:[%s8] sm:$0x3] %vm70, %v338
  $region37: #{tadabn3d_forward.2} parent=0 // pred_fallthru
    _
  // Predicated region
  $region38: #{tadabn3d_forward.2} parent=0 // pred_check
    _
  $region39: #{tadabn3d_forward.2} parent=0 // pred_check_branch
    %341 = sbr.rel (0) target = $region41
  $region40: #{tadabn3d_forward.2} parent=0 // pred_region
    _
  $region41: #{tadabn3d_forward.2} parent=0 // pred_fallthru
    _
  // Predicated region
  $region42: #{tadabn3d_forward.2} parent=0 // pred_check
    _
  $region43: #{tadabn3d_forward.2} parent=0 // pred_check_branch
    %343 = sbr.rel (0) target = $region45
  $region44: #{tadabn3d_forward.2} parent=0 // pred_region
    _
  $region45: #{tadabn3d_forward.2} parent=0 // pred_fallthru
    _
  // Predicated region
  $region46: #{tadabn3d_forward.2} parent=0 // pred_check
    _
  $region47: #{tadabn3d_forward.2} parent=0 // pred_check_branch
    %345 = sbr.rel (0) target = $region49
  $region48: #{tadabn3d_forward.2} parent=0 // pred_region
    _
  $region49: #{tadabn3d_forward.2} parent=0 // pred_fallthru
    _
  // Predicated region
  $region50: #{tadabn3d_forward.2} parent=0 // pred_check
    _
  $region51: #{tadabn3d_forward.2} parent=0 // pred_check_branch
    %347 = sbr.rel (0) target = $region53
  $region52: #{tadabn3d_forward.2} parent=0 // pred_region
    _
  $region53: #{tadabn3d_forward.2} parent=0 // pred_fallthru
    _

</llo_original>
